<compile_context>
chip_gen: v6e
topology: v6e:2x2x1
jax: 0.10.0
libtpu: 0.0.40
codegen_flags: <defaults>
</compile_context>

<pallas_src>
import functools

import jax
import jax.numpy as jnp
from jax.experimental import pallas as pl
from jax.experimental.pallas import tpu as pltpu


def _focal_loss_kernel(x_ref, t_ref, out_ref, *, gamma, ignore_index,
                       n_rows, tile_n):
    i = pl.program_id(0)

    x_in = x_ref[...]                         # (tile_n, C) logits, native dtype
    t = t_ref[...]                            # (tile_n, 1) int32 targets
    tn, C = x_in.shape

    # One-hot of the target class via an iota compare (no gather on TPU).
    col = jax.lax.broadcasted_iota(jnp.int32, (tn, C), 1)
    onehot = col == t

    # Row max and target-class pick at the *input* dtype: bf16 vregs hold
    # 16x128, halving XLU cross-lane reduce work on v6e/v7x when logits are
    # bf16.  Exact either way (a max, and a sum that picks a single element).
    m_in = jnp.max(x_in, axis=-1, keepdims=True)
    x_t_in = jnp.sum(jnp.where(onehot, x_in, jnp.zeros_like(x_in)),
                     axis=-1, keepdims=True)

    # Stable log-softmax denominator in f32 — one EUP exp per element.
    m = m_in.astype(jnp.float32)
    z = x_in.astype(jnp.float32) - m
    s = jnp.sum(jnp.exp(z), axis=-1, keepdims=True)
    logpt = (x_t_in.astype(jnp.float32) - m) - jnp.log(s)    # (tile_n, 1)

    pt = jnp.exp(logpt)
    one_minus_pt = 1.0 - pt
    if not isinstance(gamma, int):
        # float gamma lowers ** to exp(gamma*log(x)); pt can exceed 1.0 by an
        # ulp, so clamp to keep the base non-negative.  Integer gamma lowers
        # to integer_pow (plain VPU multiplies) and matches the reference
        # without a clamp.
        one_minus_pt = jnp.maximum(one_minus_pt, 0.0)
    per_row = -(one_minus_pt ** gamma) * logpt                # (tile_n, 1)

    # Mask ignore_index rows and rows past the true batch (tail tile).
    row = jax.lax.broadcasted_iota(jnp.int32, (tn, 1), 0) + i * tile_n
    valid = (t != ignore_index) & (row < n_rows)

    loss_sum = jnp.sum(jnp.where(valid, per_row, 0.0))
    cnt = jnp.sum(valid.astype(jnp.float32))

    # Lane-dense per-block partial output: lane 0 = loss sum, lane 1 = count.
    lane = jax.lax.broadcasted_iota(jnp.int32, (1, 1, 128), 2)
    out_ref[...] = jnp.where(lane == 0, loss_sum,
                             jnp.where(lane == 1, cnt, 0.0))


def _choose_tile_n(n, c, logits_dtype, vmem_budget_bytes=12 * 1024 * 1024):
    """Row tile whose real VMEM footprint fits the budget on every chip.

    Accounts for: C padded to a multiple of 128 lanes in VMEM, the logits
    dtype (bf16 halves the I/O block), the double-buffered 128-lane-padded
    (tile_n, 1) target block, and ~4x f32 tiles of in-kernel temporaries
    (z, exp(z), iota/one-hot) that Mosaic materializes.  The 12 MiB budget
    stays under v5e's 16 MiB scoped default even before the explicit
    vmem_limit_bytes, and leaves pipelining headroom on v7x (64 MiB VMEM).
    """
    if n <= 0:
        return 8
    c_pad = -(-c // 128) * 128
    itemsize = jnp.dtype(logits_dtype).itemsize
    per_row = (2 * c_pad * itemsize        # double-buffered logits block
               + 2 * 128 * 4               # double-buffered lane-padded targets
               + 4 * c_pad * 4)            # in-kernel f32/i32 temporaries
    t = max(8, (vmem_budget_bytes // per_row) // 8 * 8)
    t = min(t, 1024)                       # >=512 rows ~ HBM roofline already
    if n <= t:
        if n >= 512:
            # Enough work to be worth feeding both v7x TensorCores: 2 tiles.
            return min(t, max(8, ((-(-n // 2)) + 7) // 8 * 8))
        # Small batch: one tile (block == full batch also escapes the
        # 8-row divisibility rule).
        return n
    # Large batch: aim for >= 8 grid steps so the "parallel" batch axis keeps
    # both v7x TensorCores busy and the pipeline has steps to overlap.
    t_cap = max(8, ((-(-n // 8)) + 7) // 8 * 8)
    return max(8, min(t, t_cap))


def multi_class_focal_loss(logits, target, *, gamma=2, weight=None,
                           ignore_index=-100):
    """Pallas TPU implementation of MultiClassFocalLoss.forward.

    logits: [N, C] float, target: [N] int. Returns the mean focal NLL loss
    over non-ignored rows (torch.nn.functional.nll_loss default 'mean').
    If every row is ignored the result is 0/0 = NaN, matching PyTorch.
    """
    # TODO(synk): per-class `weight` vector not implemented (module default is
    # weight=None); would need an extra (1, C) input and a weighted mean.
    assert weight is None, "per-class weight is not supported"

    N, C = logits.shape
    assert target.shape == (N,)

    g = float(gamma)
    gamma_static = int(g) if g.is_integer() else g

    tile_n = _choose_tile_n(N, C, logits.dtype)
    num_tiles = pl.cdiv(N, tile_n)

    # NOTE: on v5e/v6e this kernel is HBM-bound; if bf16 logits are acceptable
    # to the caller, casting `logits` to bf16 before this call is ~2x on v5e.
    t2d = target.astype(jnp.int32).reshape(N, 1)

    kernel = functools.partial(
        _focal_loss_kernel, gamma=gamma_static,
        ignore_index=int(ignore_index), n_rows=N, tile_n=tile_n)

    partials = pl.pallas_call(
        kernel,
        out_shape=jax.ShapeDtypeStruct((num_tiles, 1, 128), jnp.float32),
        grid_spec=pltpu.PrefetchScalarGridSpec(
            num_scalar_prefetch=0,
            grid=(num_tiles,),
            in_specs=[
                pl.BlockSpec((tile_n, C), lambda i: (i, 0)),
                pl.BlockSpec((tile_n, 1), lambda i: (i, 0)),
            ],
            out_specs=pl.BlockSpec((1, 1, 128), lambda i: (i, 0, 0)),
        ),
        compiler_params=pltpu.CompilerParams(
            dimension_semantics=("parallel",),
            vmem_limit_bytes=32 * 1024 * 1024),
    )(logits, t2d)

    loss_sum = jnp.sum(partials[:, 0, 0])
    cnt = jnp.sum(partials[:, 0, 1])
    return loss_sum / cnt


def _reference(logits, target, gamma=2, ignore_index=-100):
    """Pure-JAX reference matching the PyTorch module."""
    logp = jax.nn.log_softmax(logits.astype(jnp.float32), axis=1)
    pt = jnp.exp(logp)
    mod = (1.0 - pt) ** gamma * logp
    valid = target != ignore_index
    t_safe = jnp.where(valid, target, 0).astype(jnp.int32)
    picked = jnp.take_along_axis(mod, t_safe[:, None], axis=1)[:, 0]
    num = jnp.sum(jnp.where(valid, -picked, 0.0))
    den = jnp.sum(valid.astype(jnp.float32))
    return num / den


if __name__ == "__main__":
    key = jax.random.PRNGKey(0)
    k1, k2, k3 = jax.random.split(key, 3)

    N, C = 16, 10  # [N, C] logits, [N] class indices (multi-class)
    logits = jax.random.normal(k1, (N, C), dtype=jnp.float32)
    target = jax.random.randint(k2, (N,), 0, C, dtype=jnp.int32)
    # Sprinkle a couple of ignore_index rows to exercise the masking path.
    drop = jax.random.bernoulli(k3, p=0.2, shape=(N,))
    target = jnp.where(drop, jnp.int32(-100), target)

    loss = multi_class_focal_loss(logits, target, gamma=2)
    loss = jax.block_until_ready(loss)

    ref = _reference(logits, target, gamma=2)
    assert jnp.allclose(loss, ref, rtol=1e-5, atol=1e-6), (loss, ref)

    print("KERNEL_OK")
</pallas_src>

<mosaic_0001>
module attributes {stable_mosaic.version = 11 : i64} {
  func.func @_focal_loss_kernel(%arg0: i32, %arg1: memref<16x10xf32, #tpu.memory_space<vmem>>, %arg2: memref<16x1xi32, #tpu.memory_space<vmem>>, %arg3: memref<1x1x128xf32, #tpu.memory_space<vmem>>) attributes {dimension_semantics = [#tpu.dimension_semantics<parallel>], iteration_bounds = array<i64: 1>, scalar_prefetch = 0 : i64, scratch_operands = 0 : i64, tpu.core_type = #tpu.core_type<tc>, window_params = [{transform_indices = @transform_0, window_bounds = array<i64: 16, 10>}, {transform_indices = @transform_1, window_bounds = array<i64: 16, 1>}, {transform_indices = @transform_2, window_bounds = array<i64: 1, 1, 128>}]} {
    %c0 = arith.constant 0 : index
    %c0_0 = arith.constant 0 : index
    %0 = vector.load %arg1[%c0, %c0_0] : memref<16x10xf32, #tpu.memory_space<vmem>>, vector<16x10xf32>
    %c0_1 = arith.constant 0 : index
    %c0_2 = arith.constant 0 : index
    %1 = vector.load %arg2[%c0_1, %c0_2] : memref<16x1xi32, #tpu.memory_space<vmem>>, vector<16x1xi32>
    %2 = tpu.iota {dimensions = array<i32: 1>} : vector<16x10xi32>
    %3 = vector.broadcast %1 : vector<16x1xi32> to vector<16x10xi32>
    %4 = arith.cmpi eq, %2, %3 : vector<16x10xi32>
    %cst = arith.constant dense<0xFF800000> : vector<16xf32>
    %5 = vector.multi_reduction <maximumf>, %0, %cst [1] : vector<16x10xf32> to vector<16xf32>
    %6 = vector.shape_cast %5 : vector<16xf32> to vector<16x1xf32>
    %cst_3 = arith.constant 0.000000e+00 : f32
    %7 = vector.broadcast %cst_3 : f32 to vector<16x10xf32>
    %8 = arith.select %4, %0, %7 : vector<16x10xi1>, vector<16x10xf32>
    %cst_4 = arith.constant dense<0.000000e+00> : vector<16xf32>
    %9 = vector.multi_reduction <add>, %8, %cst_4 [1] : vector<16x10xf32> to vector<16xf32>
    %10 = vector.shape_cast %9 : vector<16xf32> to vector<16x1xf32>
    %11 = vector.broadcast %6 : vector<16x1xf32> to vector<16x10xf32>
    %12 = arith.subf %0, %11 : vector<16x10xf32>
    %13 = math.exp %12 : vector<16x10xf32>
    %cst_5 = arith.constant dense<0.000000e+00> : vector<16xf32>
    %14 = vector.multi_reduction <add>, %13, %cst_5 [1] : vector<16x10xf32> to vector<16xf32>
    %15 = vector.shape_cast %14 : vector<16xf32> to vector<16x1xf32>
    %16 = arith.subf %10, %6 : vector<16x1xf32>
    %17 = math.log %15 : vector<16x1xf32>
    %18 = arith.subf %16, %17 : vector<16x1xf32>
    %19 = math.exp %18 : vector<16x1xf32>
    %cst_6 = arith.constant 1.000000e+00 : f32
    %20 = vector.broadcast %cst_6 : f32 to vector<16x1xf32>
    %21 = arith.subf %20, %19 : vector<16x1xf32>
    %22 = arith.mulf %21, %21 : vector<16x1xf32>
    %cst_7 = arith.constant 0.000000e+00 : f32
    %23 = vector.broadcast %cst_7 : f32 to vector<16x1xf32>
    %24 = arith.subf %23, %22 : vector<16x1xf32>
    %25 = arith.mulf %24, %18 : vector<16x1xf32>
    %26 = tpu.iota {dimensions = array<i32: 0>} : vector<16x1xi32>
    %c16_i32 = arith.constant 16 : i32
    %27 = arith.muli %arg0, %c16_i32 : i32
    %28 = vector.broadcast %27 : i32 to vector<16x1xi32>
    %29 = arith.addi %26, %28 : vector<16x1xi32>
    %c-100_i32 = arith.constant -100 : i32
    %30 = vector.broadcast %c-100_i32 : i32 to vector<16x1xi32>
    %31 = arith.cmpi ne, %1, %30 : vector<16x1xi32>
    %c16_i32_8 = arith.constant 16 : i32
    %32 = vector.broadcast %c16_i32_8 : i32 to vector<16x1xi32>
    %33 = arith.cmpi slt, %29, %32 : vector<16x1xi32>
    %34 = arith.andi %31, %33 : vector<16x1xi1>
    %cst_9 = arith.constant 0.000000e+00 : f32
    %35 = vector.broadcast %cst_9 : f32 to vector<16x1xf32>
    %36 = arith.select %34, %25, %35 : vector<16x1xi1>, vector<16x1xf32>
    %37 = vector.shape_cast %36 : vector<16x1xf32> to vector<1x16x1xf32>
    %cst_10 = arith.constant dense<0.000000e+00> : vector<1xf32>
    %38 = vector.multi_reduction <add>, %37, %cst_10 [1, 2] : vector<1x16x1xf32> to vector<1xf32>
    %39 = vector.shape_cast %38 : vector<1xf32> to vector<1x1x1xf32>
    %40 = vector.extract %39[0, 0, 0] : f32 from vector<1x1x1xf32>
    %41 = arith.extui %34 : vector<16x1xi1> to vector<16x1xi32>
    %42 = arith.sitofp %41 : vector<16x1xi32> to vector<16x1xf32>
    %43 = vector.shape_cast %42 : vector<16x1xf32> to vector<1x16x1xf32>
    %cst_11 = arith.constant dense<0.000000e+00> : vector<1xf32>
    %44 = vector.multi_reduction <add>, %43, %cst_11 [1, 2] : vector<1x16x1xf32> to vector<1xf32>
    %45 = vector.shape_cast %44 : vector<1xf32> to vector<1x1x1xf32>
    %46 = vector.extract %45[0, 0, 0] : f32 from vector<1x1x1xf32>
    %47 = tpu.iota {dimensions = array<i32: 2>} : vector<1x1x128xi32>
    %c0_i32 = arith.constant 0 : i32
    %48 = vector.broadcast %c0_i32 : i32 to vector<1x1x128xi32>
    %49 = arith.cmpi eq, %47, %48 : vector<1x1x128xi32>
    %c1_i32 = arith.constant 1 : i32
    %50 = vector.broadcast %c1_i32 : i32 to vector<1x1x128xi32>
    %51 = arith.cmpi eq, %47, %50 : vector<1x1x128xi32>
    %cst_12 = arith.constant 0.000000e+00 : f32
    %52 = vector.broadcast %46 : f32 to vector<1x1x128xf32>
    %53 = vector.broadcast %cst_12 : f32 to vector<1x1x128xf32>
    %54 = arith.select %51, %52, %53 : vector<1x1x128xi1>, vector<1x1x128xf32>
    %55 = vector.broadcast %40 : f32 to vector<1x1x128xf32>
    %56 = arith.select %49, %55, %54 : vector<1x1x128xi1>, vector<1x1x128xf32>
    %c0_13 = arith.constant 0 : index
    %c0_14 = arith.constant 0 : index
    %c0_15 = arith.constant 0 : index
    %57 = vector.load %arg3[%c0_13, %c0_14, %c0_15] : memref<1x1x128xf32, #tpu.memory_space<vmem>>, vector<1x1x128xf32>
    tpu.vector_store %arg3[%c0_13, %c0_14, %c0_15], %56 {strides = array<i32>} : memref<1x1x128xf32, #tpu.memory_space<vmem>>, vector<1x1x128xf32>,
    return
  }
  func.func @transform_0(%arg0: i32) -> (i32, i32) {
    %c0_i32 = arith.constant 0 : i32
    %c0_i32_0 = arith.constant 0 : i32
    return %arg0, %c0_i32 : i32, i32
  }
  func.func @transform_1(%arg0: i32) -> (i32, i32) {
    %c0_i32 = arith.constant 0 : i32
    %c0_i32_0 = arith.constant 0 : i32
    return %arg0, %c0_i32 : i32, i32
  }
  func.func @transform_2(%arg0: i32) -> (i32, i32, i32) {
    %c0_i32 = arith.constant 0 : i32
    %c0_i32_0 = arith.constant 0 : i32
    %c0_i32_1 = arith.constant 0 : i32
    return %arg0, %c0_i32, %c0_i32_0 : i32, i32, i32
  }
}

</mosaic_0001>

<llo_original>
// kernel: tpu_custom_call.1
$region0: #{tpu_custom_call.1}
  #allocation0 [shape = 'u32[]', space=smem, size = 0x4, offset = 0x4, fixed_abs, tag = 'smem constant byte address 0x4 - core index']
  #allocation1 [shape = 'u32[144,128]{1,0:T(1,128)}', space=vmem, size = 0x12000, scoped, tag = 'internal scratch']
  %s0 = inlined_call_operand.vmem [shape: f32[16,10], index: 0, kind: input, shape index: {}]
  %s1 = inlined_call_operand.vmem [shape: s32[16,1], index: 1, kind: input, shape index: {}]
  %s2 = inlined_call_operand.hbm [shape: f32[1,1,128], index: 2, kind: output, shape index: {}]
  %s3 = sld [smem:[#allocation0]]
  $region18: #{tpu_custom_call.1} parent=0
    _
  %s5 = ssub.s32 1, %s3
  %s6 = scalar_select 0, %s5, %s3
  $region1: #{tpu_custom_call.1} parent=0
    #allocation2 [shape = 'u8[512]{0}', space=vmem, size = 0x400, scoped, tag = 'output window, operand 0, single buffered']
    #allocation3 [shape = 's32[1]{0}', space=sflag, size = 0x4, scoped, tag = 'scoped memory for tpu_custom_call.1']
    %7 = vsyncpa [#allocation3], 0
    // Predicated region
    $region2: #{tpu_custom_call.1} parent=1 // pred_check
      _
    $region3: #{tpu_custom_call.1} parent=1 // pred_check_branch
      %9 = sbr.rel (0) target = $region5
    $region4: #{tpu_custom_call.1} parent=1 // pred_region
      _
    $region5: #{tpu_custom_call.1} parent=1 // pred_fallthru
      _
    // Predicated region
    $region6: #{tpu_custom_call.1} parent=1 // pred_check
      _
    $region7: #{tpu_custom_call.1} parent=1 // pred_check_branch
      %11 = sbr.rel (0) target = $region9
    $region8: #{tpu_custom_call.1} parent=1 // pred_region
      _
    $region9: #{tpu_custom_call.1} parent=1 // pred_fallthru
      _
    %v12 = vld [vmem:[%s0] sm:$0xff]
    %v13 = vld [vmem:[%s0 + $0x8] sm:$0xff]
    %v14 = vld [vmem:[%s1] sm:$0xff]
    %v15 = vld [vmem:[%s1 + $0x8] sm:$0xff]
    %v16 = vlaneseq
    %v17 = vand.u32 %v16, 127
    %18 = vset.pattern.permute.xlu0 0
    %19 = vperm.xlu0 %18, %v14
    %v20 = vpop.permute.xlu0 %19
    %21 = vset.pattern.permute.xlu0 0
    %22 = vperm.xlu0 %21, %v15
    %v23 = vpop.permute.xlu0 %22
    %vm24 = vcmp.eq.s32.totalorder %v17, %v20
    %vm25 = vcmp.eq.s32.totalorder %v17, %v23
    %vm26 = vcmask 80896
    %v27 = vsel %vm26, %v12, -inf
    %28 = vmax.xlane.f32.xlu0 %v27
    %v29 = vpop.xlane.xlu0 %28
    %v30 = vsel %vm26, %v13, -inf
    %31 = vmax.xlane.f32.xlu0 %v30
    %v32 = vpop.xlane.xlu0 %31
    %v33 = vsel %vm24, %v12, 0.0
    %v34 = vsel %vm25, %v13, 0.0
    %v35 = vsel %vm26, %v33, 0.0
    %36 = vadd.xlane.f32.xlu0 %v35
    %v37 = vpop.xlane.xlu0 %36
    %v38 = vsel %vm26, %v34, 0.0
    %39 = vadd.xlane.f32.xlu0 %v38
    %v40 = vpop.xlane.xlu0 %39
    %v41 = vsub.f32 %v12, %v29
    %v42 = vsub.f32 %v13, %v32
    %v43 = vmul.f32 %v41, 1.442695
    %v44 = vpow.pop %v43
    %v45 = vmul.f32 %v42, 1.442695
    %v46 = vpow.pop %v45
    %v47 = vsel %vm26, %v44, 0.0
    %48 = vadd.xlane.f32.xlu0 %v47
    %v49 = vpop.xlane.xlu0 %48
    %v50 = vsel %vm26, %v46, 0.0
    %51 = vadd.xlane.f32.xlu0 %v50
    %v52 = vpop.xlane.xlu0 %51
    %v53 = vsub.f32 %v37, %v29
    %v54 = vsub.f32 %v40, %v32
    %v55 = vlog2.pop %v49
    %v56 = vmul.f32 %v55, 0.6931472
    %v57 = vlog2.pop %v52
    %v58 = vmul.f32 %v57, 0.6931472
    %v59 = vsub.f32 %v53, %v56
    %v60 = vsub.f32 %v54, %v58
    %v61 = vmul.f32 %v59, 1.442695
    %v62 = vpow.pop %v61
    %v63 = vmul.f32 %v60, 1.442695
    %v64 = vpow.pop %v63
    %v65 = vsub.f32 1.0, %v62
    %v66 = vsub.f32 1.0, %v64
    %v67 = vmul.f32 %v65, %v65
    %v68 = vmul.f32 %v66, %v66
    %v69 = vsub.f32 0.0, %v67
    %v70 = vsub.f32 0.0, %v68
    %v71 = vmul.f32 %v69, %v59
    %v72 = vmul.f32 %v70, %v60
    %v73 = vlaneseq
    %v74 = vshrl.u32 %v73, 7
    %v75 = vadd.s32 %v74, 8
    %s76 = smul.u32 0, 16
    %v77 = vstv %s76
    %v78 = vadd.s32 %v74, %v77
    %v79 = vadd.s32 %v75, %v77
    %vm80 = vcmp.ne.s32.totalorder %v14, 4294967196
    %vm81 = vcmp.ne.s32.totalorder %v15, 4294967196
    %vm82 = vcmp.lt.s32.totalorder %v78, 16
    %vm83 = vcmp.lt.s32.totalorder %v79, 16
    %vm84 = vmand %vm80, %vm82
    %vm85 = vmand %vm81, %vm83
    %v86 = vsel %vm84, %v71, 0.0
    %v87 = vsel %vm85, %v72, 0.0
    %vm88 = vcmask 7168
    %v89 = vsel %vm88, %v86, 0.0
    %v90 = vsel %vm88, %v87, 0.0
    %v91 = vadd.f32 %v89, %v90
    %92 = vadd.xlane.f32.xlu0 %v91
    %v93 = vpop.xlane.xlu0 %92
    %v94 = vrot.slane %v93, 4
    %v95 = vadd.f32 %v93, %v94
    %v96 = vrot.slane %v95, 2
    %v97 = vadd.f32 %v95, %v96
    %v98 = vrot.slane %v97, 1
    %v99 = vadd.f32 %v97, %v98
    %s100 = vtos %v99
    %v101 = vsel %vm84, 1, 0
    %v102 = vsel %vm85, 1, 0
    %v103 = vcvt.s32.f32 %v101
    %v104 = vcvt.s32.f32 %v102
    %v105 = vsel %vm88, %v103, 0.0
    %v106 = vsel %vm88, %v104, 0.0
    %v107 = vadd.f32 %v105, %v106
    %108 = vadd.xlane.f32.xlu0 %v107
    %v109 = vpop.xlane.xlu0 %108
    %v110 = vrot.slane %v109, 4
    %v111 = vadd.f32 %v109, %v110
    %v112 = vrot.slane %v111, 2
    %v113 = vadd.f32 %v111, %v112
    %v114 = vrot.slane %v113, 1
    %v115 = vadd.f32 %v113, %v114
    %s116 = vtos %v115
    %vm117 = vcmp.eq.s32.totalorder %v17, 0
    %vm118 = vcmp.eq.s32.totalorder %v17, 1
    %v119 = vstv %s116
    %v120 = vsel %vm118, %v119, 0.0
    %v121 = vstv %s100
    %v122 = vsel %vm117, %v121, %v120
    %123 = vst [vmem:[#allocation2] sm:$0x1] %v122
    // Predicated region
    $region10: #{tpu_custom_call.1} parent=1 // pred_check
      _
    $region11: #{tpu_custom_call.1} parent=1 // pred_check_branch
      %125 = sbr.rel (0) target = $region13
    $region12: #{tpu_custom_call.1} parent=1 // pred_region
      %s127 = ssub.s32 16, 16
      %128 = vsyncadd [#allocation3], %s127
      %s130 = sshll.u32 [#allocation2], 4
      %s131 = int_to_ptr.vmem [resolvable:$true] %s130
      %133 = dma.vmem_to_hbm [thread:$0]  %s131, 16, %s2, [#allocation3]
    $region13: #{tpu_custom_call.1} parent=1 // pred_fallthru
      _
    // Predicated region
    $region14: #{tpu_custom_call.1} parent=1 // pred_check
      _
    $region15: #{tpu_custom_call.1} parent=1 // pred_check_branch
      %135 = sbr.rel (0) target = $region17
    $region16: #{tpu_custom_call.1} parent=1 // pred_region
      %136 = dma.done [#allocation3], 16
    $region17: #{tpu_custom_call.1} parent=1 // pred_fallthru
      _
    %137 = vsyncpa [#allocation3], 1

</llo_original>
